<compile_context>
chip_gen: v5e
topology: v5e:2x2
jax: 0.10.0
libtpu: 0.0.40
codegen_flags: <defaults>
</compile_context>

<pallas_src>
import jax
import jax.numpy as jnp
from jax.experimental import pallas as pl
from jax.experimental.pallas import tpu as pltpu

BN_EPS = 1e-5


# ----------------------------------------------------------------------------
# Kernel A: H-axis bilinear upsample (+ zero pad rows), one matmul per image.
# ----------------------------------------------------------------------------
def _upsample_h_kernel(wh_ref, x_ref, o_ref):
    # wh_ref: (Hout+2, Hin)  interpolation matrix with zero first/last rows
    # x_ref:  (1, Hin, Win*Cin)
    # o_ref:  (1, Hout+2, Win*Cin)
    o_ref[0] = jnp.dot(wh_ref[...], x_ref[0], preferred_element_type=jnp.float32)


# ----------------------------------------------------------------------------
# Kernel B: fused W-axis upsample + 3x3 conv + BatchNorm partial statistics.
# ----------------------------------------------------------------------------
def _conv_stats_kernel(t_ref, ww_ref, w_ref, y_ref, ssum_ref, ssq_ref, p_scr):
    # t_ref:   (1, Hout+2, Win, Cin)  H-upsampled input (VMEM-resident per n)
    # ww_ref:  (Wout+2, Win)          W interpolation matrix (zero pad rows)
    # w_ref:   (9, Cin, Cout) bf16    conv taps, k = ky*3 + kx
    # y_ref:   (1, TH, Wout, Cout)    f32 conv output tile
    # ssum_ref/ssq_ref: (1, 1, 1, Cout)  per-tile channel sum / sum of squares
    # p_scr:   (TH+2, Wout+2, Cin)    VMEM scratch: W-upsampled + padded halo rows
    _, th, wout, cout = y_ref.shape
    cin = t_ref.shape[-1]
    h0 = pl.program_id(1) * th  # first (H-padded) row needed by this tile

    # W-axis upsample of the TH+2 halo rows (f32, stays in VMEM).
    for r in range(th + 2):
        p_scr[r] = jnp.dot(ww_ref[...], t_ref[0, h0 + r],
                           preferred_element_type=jnp.float32)

    # 3x3 conv: 9 shifted taps sliced from the VMEM scratch (no HBM im2col),
    # bf16 MXU operands, f32 accumulation.
    acc = jnp.zeros((th * wout, cout), jnp.float32)
    for k in range(9):
        ky, kx = k // 3, k % 3
        tap = p_scr[ky:ky + th, kx:kx + wout, :]           # (TH, Wout, Cin)
        tap = tap.reshape(th * wout, cin).astype(jnp.bfloat16)
        acc = acc + jnp.dot(tap, w_ref[k], preferred_element_type=jnp.float32)

    y_ref[0] = acc.reshape(th, wout, cout)
    ssum_ref[0, 0] = jnp.sum(acc, axis=0, keepdims=True)
    ssq_ref[0, 0] = jnp.sum(acc * acc, axis=0, keepdims=True)


# ----------------------------------------------------------------------------
# Kernel C: BatchNorm affine (folded scale/shift) + ReLU, per tile.
# ----------------------------------------------------------------------------
def _bn_relu_kernel(y_ref, scale_ref, shift_ref, o_ref):
    o_ref[...] = jnp.maximum(y_ref[...] * scale_ref[...] + shift_ref[...], 0.0)


# ----------------------------------------------------------------------------
# Glue
# ----------------------------------------------------------------------------
def bilinear_matrix(out_size, in_size):
    """1-D bilinear interpolation matrix, align_corners=True (UpsamplingBilinear2d)."""
    out_idx = jnp.arange(out_size, dtype=jnp.float32)
    if out_size == 1:
        src = jnp.zeros((1,), jnp.float32)
    else:
        src = out_idx * (in_size - 1) / (out_size - 1)
    i0 = jnp.clip(jnp.floor(src).astype(jnp.int32), 0, in_size - 1)
    i1 = jnp.clip(i0 + 1, 0, in_size - 1)
    frac = src - i0.astype(jnp.float32)
    rows = jnp.arange(out_size)
    m = jnp.zeros((out_size, in_size), jnp.float32)
    m = m.at[rows, i0].add(1.0 - frac)
    m = m.at[rows, i1].add(frac)
    return m


def _row_tile(hout):
    # Output-row tile; TH*Wout is the M dim of the conv matmul.  (At realistic
    # sizes this would be sized against the 64 MiB VMEM of v7x.)
    for th in (8, 4, 2, 1):
        if hout % th == 0:
            return th
    return 1


def upsample_block_forward(x, params, size):
    """x: (N, Cin, Hin, Win) float32 NCHW  ->  (N, Cout, Hout, Wout) float32."""
    n, cin, hin, win = x.shape
    hout, wout = size
    cout = params["conv_w"].shape[0]
    th = _row_tile(hout)
    n_ht = hout // th

    # Separable interpolation matrices; the conv's zero padding is folded in as
    # zero first/last rows so no jnp.pad of the big activation is ever needed.
    wh_pad = jnp.pad(bilinear_matrix(hout, hin), ((1, 1), (0, 0)))   # (Hout+2, Hin)
    ww_pad = jnp.pad(bilinear_matrix(wout, win), ((1, 1), (0, 0)))   # (Wout+2, Win)

    # NCHW -> NHWC on the small, pre-upsample tensor only.
    x3 = x.transpose(0, 2, 3, 1).reshape(n, hin, win * cin)

    # ---- Kernel A: H-axis upsample ------------------------------------------
    t = pl.pallas_call(
        _upsample_h_kernel,
        out_shape=jax.ShapeDtypeStruct((n, hout + 2, win * cin), jnp.float32),
        grid=(n,),
        in_specs=[
            pl.BlockSpec((hout + 2, hin), lambda i: (0, 0)),
            pl.BlockSpec((1, hin, win * cin), lambda i: (i, 0, 0)),
        ],
        out_specs=pl.BlockSpec((1, hout + 2, win * cin), lambda i: (i, 0, 0)),
        compiler_params=pltpu.CompilerParams(dimension_semantics=("parallel",)),
    )(wh_pad, x3)
    t4 = t.reshape(n, hout + 2, win, cin)  # metadata-only reshape

    # Conv weights as 9 taps (k = ky*3 + kx), bf16 MXU operands.
    w9 = params["conv_w"].transpose(2, 3, 1, 0).reshape(9, cin, cout)
    w9 = w9.astype(jnp.bfloat16)
    # NOTE: conv bias intentionally dropped -- training-mode BatchNorm right
    # after the conv cancels any per-channel constant exactly.

    # ---- Kernel B: fused W-upsample + conv + BN partial stats ---------------
    y, ssum, ssq = pl.pallas_call(
        _conv_stats_kernel,
        out_shape=(
            jax.ShapeDtypeStruct((n, hout, wout, cout), jnp.float32),
            jax.ShapeDtypeStruct((n, n_ht, 1, cout), jnp.float32),
            jax.ShapeDtypeStruct((n, n_ht, 1, cout), jnp.float32),
        ),
        grid=(n, n_ht),
        in_specs=[
            pl.BlockSpec((1, hout + 2, win, cin), lambda i, j: (i, 0, 0, 0)),
            pl.BlockSpec((wout + 2, win), lambda i, j: (0, 0)),
            pl.BlockSpec((9, cin, cout), lambda i, j: (0, 0, 0)),
        ],
        out_specs=(
            pl.BlockSpec((1, th, wout, cout), lambda i, j: (i, j, 0, 0)),
            pl.BlockSpec((1, 1, 1, cout), lambda i, j: (i, j, 0, 0)),
            pl.BlockSpec((1, 1, 1, cout), lambda i, j: (i, j, 0, 0)),
        ),
        scratch_shapes=[pltpu.VMEM((th + 2, wout + 2, cin), jnp.float32)],
        compiler_params=pltpu.CompilerParams(
            dimension_semantics=("parallel", "parallel")),
    )(t4, ww_pad, w9)

    # ---- Tiny per-channel reduction + BN affine fold (scalar-sized glue) ----
    m_total = float(n * hout * wout)
    mean = ssum.sum(axis=(0, 1, 2)) / m_total
    var = ssq.sum(axis=(0, 1, 2)) / m_total - mean * mean
    inv_std = jax.lax.rsqrt(var + BN_EPS)
    scale = (params["gamma"] * inv_std).reshape(1, cout)
    shift = (params["beta"] - mean * params["gamma"] * inv_std).reshape(1, cout)

    # ---- Kernel C: BN apply + ReLU -------------------------------------------
    out_nhwc = pl.pallas_call(
        _bn_relu_kernel,
        out_shape=jax.ShapeDtypeStruct((n, hout, wout, cout), jnp.float32),
        grid=(n, n_ht),
        in_specs=[
            pl.BlockSpec((1, th, wout, cout), lambda i, j: (i, j, 0, 0)),
            pl.BlockSpec((1, cout), lambda i, j: (0, 0)),
            pl.BlockSpec((1, cout), lambda i, j: (0, 0)),
        ],
        out_specs=pl.BlockSpec((1, th, wout, cout), lambda i, j: (i, j, 0, 0)),
        compiler_params=pltpu.CompilerParams(
            dimension_semantics=("parallel", "parallel")),
    )(y, scale, shift)

    # Back to the module's NCHW contract (the one unavoidable big transpose).
    return out_nhwc.transpose(0, 3, 1, 2)


# ----------------------------------------------------------------------------
# Pure-JAX reference (mirrors the PyTorch module, conv bias included)
# ----------------------------------------------------------------------------
def reference_forward(x, params, size):
    hout, wout = size
    hin, win = x.shape[2], x.shape[3]
    wh = bilinear_matrix(hout, hin)
    ww = bilinear_matrix(wout, win)
    up = jnp.einsum("hp,wq,ncpq->nchw", wh, ww, x)
    y = jax.lax.conv_general_dilated(
        up, params["conv_w"], window_strides=(1, 1), padding="SAME",
        dimension_numbers=("NCHW", "OIHW", "NCHW"))
    y = y + params["conv_b"][None, :, None, None]
    mean = y.mean(axis=(0, 2, 3), keepdims=True)
    var = ((y - mean) ** 2).mean(axis=(0, 2, 3), keepdims=True)
    y = (y - mean) / jnp.sqrt(var + BN_EPS)
    y = y * params["gamma"][None, :, None, None] + params["beta"][None, :, None, None]
    return jnp.maximum(y, 0.0)


# ----------------------------------------------------------------------------
# Main
# ----------------------------------------------------------------------------
if __name__ == "__main__":
    N, Cin, Cout = 2, 4, 8
    Hin = Win = 8
    size = (16, 16)

    key = jax.random.PRNGKey(0)
    k_x, k_w, k_b, k_g, k_be = jax.random.split(key, 5)

    x = jax.random.normal(k_x, (N, Cin, Hin, Win), dtype=jnp.float32)
    params = {
        "conv_w": 0.1 * jax.random.normal(k_w, (Cout, Cin, 3, 3), dtype=jnp.float32),
        "conv_b": 0.1 * jax.random.normal(k_b, (Cout,), dtype=jnp.float32),
        "gamma": 1.0 + 0.1 * jax.random.normal(k_g, (Cout,), dtype=jnp.float32),
        "beta": 0.1 * jax.random.normal(k_be, (Cout,), dtype=jnp.float32),
    }

    out = jax.block_until_ready(upsample_block_forward(x, params, size))
    ref = jax.block_until_ready(reference_forward(x, params, size))

    assert out.shape == (N, Cout, size[0], size[1]), out.shape
    max_err = float(jnp.max(jnp.abs(out - ref)))
    # Tolerance reflects bf16 MXU operands in the conv (f32 accumulation).
    assert max_err < 3e-2, f"mismatch vs reference: {max_err}"

    print("KERNEL_OK")
</pallas_src>

<mosaic_0001>
module attributes {stable_mosaic.version = 11 : i64} {
  func.func @_upsample_h_kernel(%arg0: i32, %arg1: memref<18x8xf32, #tpu.memory_space<vmem>>, %arg2: memref<1x8x32xf32, #tpu.memory_space<vmem>>, %arg3: memref<1x18x32xf32, #tpu.memory_space<vmem>>) attributes {dimension_semantics = [#tpu.dimension_semantics<parallel>], iteration_bounds = array<i64: 2>, scalar_prefetch = 0 : i64, scratch_operands = 0 : i64, tpu.core_type = #tpu.core_type<tc>, window_params = [{pipeline_mode = #tpu.pipeline_mode<synchronous>, transform_indices = @transform_0, window_bounds = array<i64: 18, 8>}, {transform_indices = @transform_1, window_bounds = array<i64: 1, 8, 32>}, {transform_indices = @transform_2, window_bounds = array<i64: 1, 18, 32>}]} {
    %c0 = arith.constant 0 : index
    %c0_0 = arith.constant 0 : index
    %0 = vector.load %arg1[%c0, %c0_0] : memref<18x8xf32, #tpu.memory_space<vmem>>, vector<18x8xf32>
    %c0_1 = arith.constant 0 : index
    %c0_2 = arith.constant 0 : index
    %c0_3 = arith.constant 0 : index
    %1 = vector.load %arg2[%c0_1, %c0_2, %c0_3] : memref<1x8x32xf32, #tpu.memory_space<vmem>>, vector<1x8x32xf32>
    %2 = vector.shape_cast %1 : vector<1x8x32xf32> to vector<8x32xf32>
    %cst = arith.constant dense<0.000000e+00> : vector<18x32xf32>
    %3 = tpu.matmul %0, %2, %cst {dimension_numbers = #tpu.dot_dimension_numbers<[1], [0], [0], [1], [0, 0, 1, 1], [], []>} : vector<18x8xf32>, vector<8x32xf32>, vector<18x32xf32> -> vector<18x32xf32>
    %c0_4 = arith.constant 0 : index
    %c0_5 = arith.constant 0 : index
    %c0_6 = arith.constant 0 : index
    %4 = vector.load %arg3[%c0_4, %c0_5, %c0_6] : memref<1x18x32xf32, #tpu.memory_space<vmem>>, vector<1x18x32xf32>
    %5 = vector.shape_cast %4 : vector<1x18x32xf32> to vector<18x32xf32>
    %6 = vector.shape_cast %3 : vector<18x32xf32> to vector<1x18x32xf32>
    tpu.vector_store %arg3[%c0_4, %c0_5, %c0_6], %6 {strides = array<i32>} : memref<1x18x32xf32, #tpu.memory_space<vmem>>, vector<1x18x32xf32>,
    return
  }
  func.func @transform_0(%arg0: i32) -> (i32, i32) {
    %c0_i32 = arith.constant 0 : i32
    %c0_i32_0 = arith.constant 0 : i32
    %c0_i32_1 = arith.constant 0 : i32
    return %c0_i32, %c0_i32_0 : i32, i32
  }
  func.func @transform_1(%arg0: i32) -> (i32, i32, i32) {
    %c0_i32 = arith.constant 0 : i32
    %c0_i32_0 = arith.constant 0 : i32
    %c0_i32_1 = arith.constant 0 : i32
    return %arg0, %c0_i32, %c0_i32_0 : i32, i32, i32
  }
  func.func @transform_2(%arg0: i32) -> (i32, i32, i32) {
    %c0_i32 = arith.constant 0 : i32
    %c0_i32_0 = arith.constant 0 : i32
    %c0_i32_1 = arith.constant 0 : i32
    return %arg0, %c0_i32, %c0_i32_0 : i32, i32, i32
  }
}

</mosaic_0001>

<llo_original>
// kernel: tpu_custom_call.1
$region0: #{tpu_custom_call.1}
  #allocation0 [shape = 'u32[]', space=smem, size = 0x4, offset = 0x4, fixed_abs, tag = 'smem constant byte address 0x4 - core index']
  #allocation1 [shape = 'u32[72,128]{1,0:T(1,128)}', space=vmem, size = 0x9000, scoped, tag = 'internal scratch']
  %s0 = inlined_call_operand.vmem [shape: f32[18,8], index: 0, kind: input, shape index: {}]
  %s1 = inlined_call_operand.vmem [shape: f32[2,8,32], index: 1, kind: input, shape index: {}]
  %s2 = inlined_call_operand.vmem [shape: f32[2,18,32], index: 2, kind: output, shape index: {}]
  %s3 = sld [smem:[#allocation0]]
  $region41: #{tpu_custom_call.1} parent=0
    _
  %s5 = ssub.s32 1, %s3
  %s6 = scalar_select 0, %s5, %s3
  loop: start=0, step=1, limit=4
  $region2: #{tpu_custom_call.1} parent=0 // loop_pre_header
    _
  $region3: #{tpu_custom_call.1} parent=0 // loop_header
    %s8 = sphi 0, %s12
    %p9 = scmp.ge.s32.totalorder %s8, 4
    %s16 = sphi 0, %s16
    %s18 = sphi 0, %s16
    %s19 = sphi 0, %s18
    %s33 = sphi 0, %s19
    %s39 = sphi 0, %s41
    %s42 = sphi 0, %s39
    %s43 = sphi 0, %s42
    %s59 = sphi 0, %s43
    %s65 = sphi 0, %s67
    %s68 = sphi 0, %s65
    %s69 = sphi 0, %s68
    %s85 = sphi 0, %s69
  $region4: #{tpu_custom_call.1} parent=0 // loop_header_branch
    %11 = sbr.rel (%p9) target = $region8
  $region5: #{tpu_custom_call.1} parent=0 // loop_body
    %s13 = ssub.s32 %s8, 1
    %s14 = ssub.s32 %s8, 2
    %s15 = sadd.s32 %s8, 1
    %s17 = sadd.s32 %s16, 1
    %p20 = scmp.eq.s32.totalorder %s8, 1
    %p21 = scmp.ne.s32.totalorder %s16, %s18
    %p22 = scmp.eq.s32.totalorder %s8, 0
    %p23 = por %p21, %p22
    %p24 = scmp.ne.s32.totalorder %s16, %s18
    %p25 = scmp.eq.s32.totalorder %s13, 1
    %p26 = por %p24, %p25
    %p27 = scmp.ne.s32.totalorder %s18, %s19
    %p28 = scmp.eq.s32.totalorder %s13, 0
    %p29 = por %p27, %p28
    %p30 = scmp.ne.s32.totalorder %s18, %s19
    %p31 = scmp.eq.s32.totalorder %s14, 1
    %p32 = por %p30, %p31
    %p34 = scmp.ne.s32.totalorder %s19, %s33
    %p35 = scmp.eq.s32.totalorder %s14, 0
    %p36 = por %p34, %p35
    %s37 = ssub.s32 %s8, %s15
    %p38 = scmp.eq.s32.totalorder %s37, 0
    %s40 = sadd.s32 %s39, 1
    %s41 = scalar_select %p38, %s39, %s40
    %p44 = pneg %p38
    %p45 = scmp.eq.s32.totalorder %s8, 1
    %p46 = por %p44, %p45
    %p47 = scmp.ne.s32.totalorder %s39, %s42
    %p48 = scmp.eq.s32.totalorder %s8, 0
    %p49 = por %p47, %p48
    %p50 = scmp.ne.s32.totalorder %s39, %s42
    %p51 = scmp.eq.s32.totalorder %s13, 1
    %p52 = por %p50, %p51
    %p53 = scmp.ne.s32.totalorder %s42, %s43
    %p54 = scmp.eq.s32.totalorder %s13, 0
    %p55 = por %p53, %p54
    %p56 = scmp.ne.s32.totalorder %s42, %s43
    %p57 = scmp.eq.s32.totalorder %s14, 1
    %p58 = por %p56, %p57
    %p60 = scmp.ne.s32.totalorder %s43, %s59
    %p61 = scmp.eq.s32.totalorder %s14, 0
    %p62 = por %p60, %p61
    %s63 = ssub.s32 %s8, %s15
    %p64 = scmp.eq.s32.totalorder %s63, 0
    %s66 = sadd.s32 %s65, 1
    %s67 = scalar_select %p64, %s65, %s66
    %p70 = pneg %p64
    %p71 = scmp.eq.s32.totalorder %s8, 1
    %p72 = por %p70, %p71
    %p73 = scmp.ne.s32.totalorder %s65, %s68
    %p74 = scmp.eq.s32.totalorder %s8, 0
    %p75 = por %p73, %p74
    %p76 = scmp.ne.s32.totalorder %s65, %s68
    %p77 = scmp.eq.s32.totalorder %s13, 1
    %p78 = por %p76, %p77
    %p79 = scmp.ne.s32.totalorder %s68, %s69
    %p80 = scmp.eq.s32.totalorder %s13, 0
    %p81 = por %p79, %p80
    %p82 = scmp.ne.s32.totalorder %s68, %s69
    %p83 = scmp.eq.s32.totalorder %s14, 1
    %p84 = por %p82, %p83
    %p86 = scmp.ne.s32.totalorder %s69, %s85
    %p87 = scmp.eq.s32.totalorder %s14, 0
    %p88 = por %p86, %p87
    %p89 = scmp.le.s32.totalorder 1, %s8
    %p90 = scmp.lt.s32.totalorder %s8, 3
    %p91 = pnand %p89, %p90
    %p92 = pneg %p91
    // Predicated region
    $region9: #{tpu_custom_call.1} parent=5 // pred_check
      _
    $region10: #{tpu_custom_call.1} parent=5 // pred_check_branch
      %94 = sbr.rel (%p91) target = $region12
    $region11: #{tpu_custom_call.1} parent=5 // pred_region
      %s95 = ssub.s32 %s8, 1
      // Predicated region
      $region13: #{tpu_custom_call.1} parent=11 // pred_check
        %p96 = pneg %p29
      $region14: #{tpu_custom_call.1} parent=11 // pred_check_branch
        %98 = sbr.rel (%p96) target = $region16
      $region15: #{tpu_custom_call.1} parent=11 // pred_region
        _
      $region16: #{tpu_custom_call.1} parent=11 // pred_fallthru
        _
    $region12: #{tpu_custom_call.1} parent=5 // pred_fallthru
      _
    %p99 = scmp.lt.s32.totalorder %s8, 2
    // Predicated region
    $region17: #{tpu_custom_call.1} parent=5 // pred_check
      %p100 = pneg %p99
    $region18: #{tpu_custom_call.1} parent=5 // pred_check_branch
      %102 = sbr.rel (%p100) target = $region20
    $region19: #{tpu_custom_call.1} parent=5 // pred_region
      // Predicated region
      $region21: #{tpu_custom_call.1} parent=19 // pred_check
        %p103 = pneg %p49
      $region22: #{tpu_custom_call.1} parent=19 // pred_check_branch
        %105 = sbr.rel (%p103) target = $region24
      $region23: #{tpu_custom_call.1} parent=19 // pred_region
        %p106 = scmp.lt.s32.totalorder %s8, 1
        %s107 = scalar_select %p106, %s8, 1
        %s108 = smul.addr %s107, 8
        %s109 = scalar_lea.vmem %s1, %s108
      $region24: #{tpu_custom_call.1} parent=19 // pred_fallthru
        _
    $region20: #{tpu_custom_call.1} parent=5 // pred_fallthru
      _
    %p110 = scmp.le.s32.totalorder 1, %s8
    %p111 = scmp.lt.s32.totalorder %s8, 3
    %p112 = pnand %p110, %p111
    %p113 = pneg %p112
    // Predicated region
    $region25: #{tpu_custom_call.1} parent=5 // pred_check
      _
    $region26: #{tpu_custom_call.1} parent=5 // pred_check_branch
      %115 = sbr.rel (%p112) target = $region28
    $region27: #{tpu_custom_call.1} parent=5 // pred_region
      %s116 = ssub.s32 %s8, 1
      %p117 = pneg %p29
      %p118 = pneg %p26
      %p119 = scmp.lt.s32.totalorder %s13, 1
      %s120 = scalar_select %p119, %s13, 1
      %s121 = smul.addr %s120, 8
      %s122 = scalar_lea.vmem %s1, %s121
      %p123 = pneg %p55
      %p124 = pneg %p52
      %p125 = pneg %p81
      %p126 = pneg %p78
      %p127 = scmp.lt.s32.totalorder %s13, 1
      %s128 = scalar_select %p127, %s13, 1
      %s129 = smul.addr %s128, 3
      %s130 = smul.addr %s129, 8
      %s131 = scalar_lea.vmem %s2, %s130
      %p132 = scmp.lt.s32.totalorder %s13, 1
      %s133 = scalar_select %p132, %s13, 1
      %s134 = smul.addr %s133, 8
      %s135 = scalar_lea.vmem %s1, %s134
      %p136 = scmp.lt.s32.totalorder %s13, 1
      %s137 = scalar_select %p136, %s13, 1
      %s138 = smul.addr %s137, 3
      %s139 = smul.addr %s138, 8
      %s140 = scalar_lea.vmem %s2, %s139
      %v141 = vld [vmem:[%s0] sm:$0xff]
      %v142 = vld [vmem:[%s0 + $0x8] sm:$0xff]
      %v143 = vld [vmem:[%s0 + $0x10] sm:$0x3]
      %v144 = vld [vmem:[%s135] sm:$0xff]
      %vm145 = vcmask 64512
      %v147 = vsel %vm145, %v141, 0
      %v150 = vsel %vm145, %v142, 0
      %v153 = vsel %vm145, %v143, 0
      %155 = vmatpush.msra.mxu0 0.0
      %156 = vmatpush.msra.mxu0 0.0
      %157 = vmatpush.msra.mxu0 0.0
      %158 = vmatpush.msra.mxu0 0.0
      %159 = vmatpush.msra.mxu0 0.0
      %160 = vmatpush.msra.mxu0 0.0
      %161 = vmatpush.msra.mxu0 0.0
      %162 = vmatpush.msra.mxu0 0.0
      %163 = vmatpush.msra.mxu0 0.0
      %164 = vmatpush.msra.mxu0 0.0
      %165 = vmatpush.msra.mxu0 0.0
      %166 = vmatpush.msra.mxu0 0.0
      %167 = vmatpush.msra.mxu0 0.0
      %168 = vmatpush.msra.mxu0 0.0
      %169 = vmatpush.msra.mxu0 0.0
      %170 = vmatpush.msra.mxu0 %v144
      %171 = vmatmul.f32.gmra.mxu0 %v147
      %v172 = vpop.f32.mrf.mxu0
      %v173 = vadd.f32 0.0, %v172
      %174 = vmatmul.f32.gmra.mxu0 %v150
      %v175 = vpop.f32.mrf.mxu0
      %v176 = vadd.f32 0.0, %v175
      %177 = vmatmul.f32.gmra.mxu0 %v153
      %v178 = vpop.f32.mrf.mxu0
      %v179 = vadd.f32 0.0, %v178
      %180 = vdwg.mxu0
      %vm181 = vcmask 261120
      %182 = vst.msk [vmem:[%s140] sm:$0xff] %vm181, %v173
      %183 = vst.msk [vmem:[%s140 + $0x8] sm:$0xff] %vm181, %v176
      %vm184 = vcmask 254976
      %185 = vst.msk [vmem:[%s140 + $0x10] sm:$0x3] %vm184, %v179
      %p186 = scmp.lt.s32.totalorder %s13, 1
      %s187 = scalar_select %p186, %s13, 1
      %s188 = smul.addr %s187, 3
      %s189 = smul.addr %s188, 8
      %s190 = scalar_lea.vmem %s2, %s189
      // Predicated region
      $region29: #{tpu_custom_call.1} parent=27 // pred_check
        %p191 = pneg %p78
      $region30: #{tpu_custom_call.1} parent=27 // pred_check_branch
        %193 = sbr.rel (%p191) target = $region32
      $region31: #{tpu_custom_call.1} parent=27 // pred_region
        _
      $region32: #{tpu_custom_call.1} parent=27 // pred_fallthru
        _
    $region28: #{tpu_custom_call.1} parent=5 // pred_fallthru
      _
    %p194 = scmp.le.s32.totalorder 2, %s8
    // Predicated region
    $region33: #{tpu_custom_call.1} parent=5 // pred_check
      %p195 = pneg %p194
    $region34: #{tpu_custom_call.1} parent=5 // pred_check_branch
      %197 = sbr.rel (%p195) target = $region36
    $region35: #{tpu_custom_call.1} parent=5 // pred_region
      %s198 = ssub.s32 %s8, 2
      // Predicated region
      $region37: #{tpu_custom_call.1} parent=35 // pred_check
        %p199 = pneg %p84
      $region38: #{tpu_custom_call.1} parent=35 // pred_check_branch
        %201 = sbr.rel (%p199) target = $region40
      $region39: #{tpu_custom_call.1} parent=35 // pred_region
        %p202 = scmp.lt.s32.totalorder %s14, 1
        %s203 = scalar_select %p202, %s14, 1
        %s204 = smul.addr %s203, 3
        %s205 = smul.addr %s204, 8
        %s206 = scalar_lea.vmem %s2, %s205
      $region40: #{tpu_custom_call.1} parent=35 // pred_fallthru
        _
    $region36: #{tpu_custom_call.1} parent=5 // pred_fallthru
      _
  $region6: #{tpu_custom_call.1} parent=0 // loop_footer
    %s12 = sadd.s32 1, %s8
  $region7: #{tpu_custom_call.1} parent=0 // loop_footer_branch
    %7 = sbr.rel target = $region3
  $region8: #{tpu_custom_call.1} parent=0 // loop_exit
    _

</llo_original>
